<compile_context>
chip_gen: v7x
topology: tpu7x:2x2x1
jax: 0.10.0
libtpu: 0.0.40
codegen_flags: <defaults>
</compile_context>

<pallas_src>
import functools

import jax
import jax.numpy as jnp
from jax import lax
from jax.experimental import pallas as pl
from jax.experimental.pallas import tpu as pltpu

_LANES = 128
_BLOCK_ROWS = 512            # 512 x 128 x 4 B = 256 KiB per f32 buffer

_N_HASHES = 6                # 2 x 16-bit uniforms per hash -> 12 uniforms (CLT)
_N_UNIFORM = 2 * _N_HASHES
_SUM_MEAN = _N_UNIFORM * (65536 - 1) / 2.0
_SUM_STD = (_N_UNIFORM * (65536.0 ** 2 - 1.0) / 12.0) ** 0.5


def _lowbias32(x):
    """32-bit integer finalizer (hash-prospector 'lowbias32'). uint32 in/out."""
    x = x ^ (x >> 16)
    x = x * jnp.uint32(0x7FEB352D)
    x = x ^ (x >> 15)
    x = x * jnp.uint32(0x846CA68B)
    x = x ^ (x >> 16)
    return x


def _gaussian_noise_kernel(seed_ref, x_ref, o_ref, *, mean, stdev):
    tm, lanes = x_ref.shape
    row0 = pl.program_id(0) * tm

    # Global flat element index of every slot in this tile -> noise stream is
    # independent of grid/tiling and of which core runs the step.
    rows = lax.broadcasted_iota(jnp.int32, (tm, lanes), 0) + row0
    cols = lax.broadcasted_iota(jnp.int32, (tm, lanes), 1)
    idx = (rows * lanes + cols).astype(jnp.uint32)

    seed = seed_ref[0].astype(jnp.uint32)

    # CLT Gaussian: sum of 12 independent 16-bit uniforms (two per hash word).
    total = jnp.zeros((tm, lanes), jnp.float32)
    for j in range(_N_HASHES):
        stream_c = ((j + 1) * 0x9E3779B9) & 0xFFFFFFFF
        key = _lowbias32(seed + jnp.uint32(stream_c))      # scalar per stream
        bits = _lowbias32(idx ^ key)
        lo = (bits & jnp.uint32(0xFFFF)).astype(jnp.int32).astype(jnp.float32)
        hi = (bits >> 16).astype(jnp.int32).astype(jnp.float32)
        total = total + lo + hi

    z = (total - jnp.float32(_SUM_MEAN)) * jnp.float32(1.0 / _SUM_STD)
    noisy = x_ref[...].astype(jnp.float32) + (
        jnp.float32(mean) + jnp.float32(stdev) * z
    )
    o_ref[...] = noisy.astype(o_ref.dtype)


def gaussian_noise(x, *, mean, stdev, seed, training=True):
    """out = x + N(mean, stdev) (elementwise) when training, else x."""
    if not training:
        return x

    orig_shape = x.shape
    orig_dtype = x.dtype
    flat = x.reshape(-1)
    n = flat.shape[0]

    # Lane-dense 2-D view (m, 128). Pad only the (rare) remainder to complete
    # the last 128-lane row; typical CNN activations need no pad / no slice.
    rem = (-n) % _LANES
    if rem:
        flat = jnp.pad(flat, (0, rem))
    m = flat.shape[0] // _LANES
    x2d = flat.reshape(m, _LANES)

    # Block rows: full m if small (always legal), else 512 (multiple of 8);
    # Pallas masks the ragged last block.
    tm = m if m <= _BLOCK_ROWS else _BLOCK_ROWS
    grid = (pl.cdiv(m, tm),)

    seed_arr = jnp.asarray([seed], dtype=jnp.int32)

    kernel = functools.partial(
        _gaussian_noise_kernel, mean=float(mean), stdev=float(stdev)
    )

    out2d = pl.pallas_call(
        kernel,
        out_shape=jax.ShapeDtypeStruct((m, _LANES), orig_dtype),
        grid=grid,
        in_specs=[
            pl.BlockSpec(memory_space=pltpu.SMEM),            # seed scalar
            pl.BlockSpec((tm, _LANES), lambda i: (i, 0)),     # x tile
        ],
        out_specs=pl.BlockSpec((tm, _LANES), lambda i: (i, 0)),
        compiler_params=pltpu.CompilerParams(
            dimension_semantics=("parallel",)
        ),
    )(seed_arr, x2d)

    # TODO(synk): on real TPU the HW PRNG (pltpu.prng_seed/stateful_normal)
    # would cut the per-element hashing cost, but it has no interpret/CPU
    # lowering, so the portable counter-based hash is used instead.

    if rem:
        return out2d.reshape(-1)[:n].reshape(orig_shape)
    return out2d.reshape(orig_shape)


if __name__ == "__main__":
    key = jax.random.PRNGKey(0)
    # Small NCHW input consistent with use inside a CNN nn.Sequential.
    x = jax.random.normal(key, (2, 4, 16, 16), dtype=jnp.float32)

    mean, stdev = 0.0, 0.1

    out = gaussian_noise(x, mean=mean, stdev=stdev, seed=1234, training=True)
    out = jax.block_until_ready(out)

    assert out.shape == x.shape and out.dtype == x.dtype

    # Sanity check: residual (out - x) should look like N(mean, stdev).
    resid = out - x
    r_mean = float(jnp.mean(resid))
    r_std = float(jnp.std(resid))
    assert abs(r_mean - mean) < 0.05, f"noise mean off: {r_mean}"
    assert abs(r_std - stdev) < 0.05, f"noise stdev off: {r_std}"

    # Different seeds give different noise.
    out2 = jax.block_until_ready(
        gaussian_noise(x, mean=mean, stdev=stdev, seed=99, training=True)
    )
    assert not bool(jnp.all(out2 == out))

    # Eval mode: identity.
    out_eval = jax.block_until_ready(
        gaussian_noise(x, mean=mean, stdev=stdev, seed=1234, training=False)
    )
    assert bool(jnp.all(out_eval == x))

    print("KERNEL_OK")
</pallas_src>

<mosaic_0001>
module attributes {stable_mosaic.version = 11 : i64} {
  func.func @_gaussian_noise_kernel(%arg0: i32, %arg1: memref<1xi32, #tpu.memory_space<smem>>, %arg2: memref<16x128xf32, #tpu.memory_space<vmem>>, %arg3: memref<16x128xf32, #tpu.memory_space<vmem>>) attributes {dimension_semantics = [#tpu.dimension_semantics<parallel>], iteration_bounds = array<i64: 1>, scalar_prefetch = 0 : i64, scratch_operands = 0 : i64, tpu.core_type = #tpu.core_type<tc>, window_params = [{transform_indices = @transform_0, window_bounds = array<i64: 1>}, {transform_indices = @transform_1, window_bounds = array<i64: 16, 128>}, {transform_indices = @transform_2, window_bounds = array<i64: 16, 128>}]} {
    %c16_i32 = arith.constant 16 : i32
    %0 = arith.muli %arg0, %c16_i32 : i32
    %1 = tpu.iota {dimensions = array<i32: 0>} : vector<16x128xi32>
    %2 = vector.broadcast %0 : i32 to vector<16x128xi32>
    %3 = arith.addi %1, %2 : vector<16x128xi32>
    %4 = tpu.iota {dimensions = array<i32: 1>} : vector<16x128xi32>
    %c128_i32 = arith.constant 128 : i32
    %5 = vector.broadcast %c128_i32 : i32 to vector<16x128xi32>
    %6 = arith.muli %3, %5 : vector<16x128xi32>
    %7 = arith.addi %6, %4 : vector<16x128xi32>
    %c0 = arith.constant 0 : index
    %8 = memref.load %arg1[%c0] : memref<1xi32, #tpu.memory_space<smem>>
    %cst = arith.constant 0.000000e+00 : f32
    %9 = vector.broadcast %cst : f32 to vector<16x128xf32>
    %c-1640531527_i32 = arith.constant -1640531527 : i32
    %10 = arith.addi %8, %c-1640531527_i32 : i32
    %c16_i32_0 = arith.constant 16 : i32
    %11 = arith.shrui %10, %c16_i32_0 : i32
    %12 = arith.xori %10, %11 : i32
    %c2146121005_i32 = arith.constant 2146121005 : i32
    %13 = arith.muli %12, %c2146121005_i32 : i32
    %c15_i32 = arith.constant 15 : i32
    %14 = arith.shrui %13, %c15_i32 : i32
    %15 = arith.xori %13, %14 : i32
    %c-2073254261_i32 = arith.constant -2073254261 : i32
    %16 = arith.muli %15, %c-2073254261_i32 : i32
    %c16_i32_1 = arith.constant 16 : i32
    %17 = arith.shrui %16, %c16_i32_1 : i32
    %18 = arith.xori %16, %17 : i32
    %19 = vector.broadcast %18 : i32 to vector<16x128xi32>
    %20 = arith.xori %7, %19 : vector<16x128xi32>
    %c16_i32_2 = arith.constant 16 : i32
    %21 = vector.broadcast %c16_i32_2 : i32 to vector<16x128xi32>
    %22 = arith.shrui %20, %21 : vector<16x128xi32>
    %23 = arith.xori %20, %22 : vector<16x128xi32>
    %c2146121005_i32_3 = arith.constant 2146121005 : i32
    %24 = vector.broadcast %c2146121005_i32_3 : i32 to vector<16x128xi32>
    %25 = arith.muli %23, %24 : vector<16x128xi32>
    %c15_i32_4 = arith.constant 15 : i32
    %26 = vector.broadcast %c15_i32_4 : i32 to vector<16x128xi32>
    %27 = arith.shrui %25, %26 : vector<16x128xi32>
    %28 = arith.xori %25, %27 : vector<16x128xi32>
    %c-2073254261_i32_5 = arith.constant -2073254261 : i32
    %29 = vector.broadcast %c-2073254261_i32_5 : i32 to vector<16x128xi32>
    %30 = arith.muli %28, %29 : vector<16x128xi32>
    %c16_i32_6 = arith.constant 16 : i32
    %31 = vector.broadcast %c16_i32_6 : i32 to vector<16x128xi32>
    %32 = arith.shrui %30, %31 : vector<16x128xi32>
    %33 = arith.xori %30, %32 : vector<16x128xi32>
    %c65535_i32 = arith.constant 65535 : i32
    %34 = vector.broadcast %c65535_i32 : i32 to vector<16x128xi32>
    %35 = arith.andi %33, %34 : vector<16x128xi32>
    %36 = arith.sitofp %35 : vector<16x128xi32> to vector<16x128xf32>
    %c16_i32_7 = arith.constant 16 : i32
    %37 = vector.broadcast %c16_i32_7 : i32 to vector<16x128xi32>
    %38 = arith.shrui %33, %37 : vector<16x128xi32>
    %39 = arith.sitofp %38 : vector<16x128xi32> to vector<16x128xf32>
    %40 = arith.addf %9, %36 : vector<16x128xf32>
    %41 = arith.addf %40, %39 : vector<16x128xf32>
    %c1013904242_i32 = arith.constant 1013904242 : i32
    %42 = arith.addi %8, %c1013904242_i32 : i32
    %c16_i32_8 = arith.constant 16 : i32
    %43 = arith.shrui %42, %c16_i32_8 : i32
    %44 = arith.xori %42, %43 : i32
    %c2146121005_i32_9 = arith.constant 2146121005 : i32
    %45 = arith.muli %44, %c2146121005_i32_9 : i32
    %c15_i32_10 = arith.constant 15 : i32
    %46 = arith.shrui %45, %c15_i32_10 : i32
    %47 = arith.xori %45, %46 : i32
    %c-2073254261_i32_11 = arith.constant -2073254261 : i32
    %48 = arith.muli %47, %c-2073254261_i32_11 : i32
    %c16_i32_12 = arith.constant 16 : i32
    %49 = arith.shrui %48, %c16_i32_12 : i32
    %50 = arith.xori %48, %49 : i32
    %51 = vector.broadcast %50 : i32 to vector<16x128xi32>
    %52 = arith.xori %7, %51 : vector<16x128xi32>
    %c16_i32_13 = arith.constant 16 : i32
    %53 = vector.broadcast %c16_i32_13 : i32 to vector<16x128xi32>
    %54 = arith.shrui %52, %53 : vector<16x128xi32>
    %55 = arith.xori %52, %54 : vector<16x128xi32>
    %c2146121005_i32_14 = arith.constant 2146121005 : i32
    %56 = vector.broadcast %c2146121005_i32_14 : i32 to vector<16x128xi32>
    %57 = arith.muli %55, %56 : vector<16x128xi32>
    %c15_i32_15 = arith.constant 15 : i32
    %58 = vector.broadcast %c15_i32_15 : i32 to vector<16x128xi32>
    %59 = arith.shrui %57, %58 : vector<16x128xi32>
    %60 = arith.xori %57, %59 : vector<16x128xi32>
    %c-2073254261_i32_16 = arith.constant -2073254261 : i32
    %61 = vector.broadcast %c-2073254261_i32_16 : i32 to vector<16x128xi32>
    %62 = arith.muli %60, %61 : vector<16x128xi32>
    %c16_i32_17 = arith.constant 16 : i32
    %63 = vector.broadcast %c16_i32_17 : i32 to vector<16x128xi32>
    %64 = arith.shrui %62, %63 : vector<16x128xi32>
    %65 = arith.xori %62, %64 : vector<16x128xi32>
    %c65535_i32_18 = arith.constant 65535 : i32
    %66 = vector.broadcast %c65535_i32_18 : i32 to vector<16x128xi32>
    %67 = arith.andi %65, %66 : vector<16x128xi32>
    %68 = arith.sitofp %67 : vector<16x128xi32> to vector<16x128xf32>
    %c16_i32_19 = arith.constant 16 : i32
    %69 = vector.broadcast %c16_i32_19 : i32 to vector<16x128xi32>
    %70 = arith.shrui %65, %69 : vector<16x128xi32>
    %71 = arith.sitofp %70 : vector<16x128xi32> to vector<16x128xf32>
    %72 = arith.addf %41, %68 : vector<16x128xf32>
    %73 = arith.addf %72, %71 : vector<16x128xf32>
    %c-626627285_i32 = arith.constant -626627285 : i32
    %74 = arith.addi %8, %c-626627285_i32 : i32
    %c16_i32_20 = arith.constant 16 : i32
    %75 = arith.shrui %74, %c16_i32_20 : i32
    %76 = arith.xori %74, %75 : i32
    %c2146121005_i32_21 = arith.constant 2146121005 : i32
    %77 = arith.muli %76, %c2146121005_i32_21 : i32
    %c15_i32_22 = arith.constant 15 : i32
    %78 = arith.shrui %77, %c15_i32_22 : i32
    %79 = arith.xori %77, %78 : i32
    %c-2073254261_i32_23 = arith.constant -2073254261 : i32
    %80 = arith.muli %79, %c-2073254261_i32_23 : i32
    %c16_i32_24 = arith.constant 16 : i32
    %81 = arith.shrui %80, %c16_i32_24 : i32
    %82 = arith.xori %80, %81 : i32
    %83 = vector.broadcast %82 : i32 to vector<16x128xi32>
    %84 = arith.xori %7, %83 : vector<16x128xi32>
    %c16_i32_25 = arith.constant 16 : i32
    %85 = vector.broadcast %c16_i32_25 : i32 to vector<16x128xi32>
    %86 = arith.shrui %84, %85 : vector<16x128xi32>
    %87 = arith.xori %84, %86 : vector<16x128xi32>
    %c2146121005_i32_26 = arith.constant 2146121005 : i32
    %88 = vector.broadcast %c2146121005_i32_26 : i32 to vector<16x128xi32>
    %89 = arith.muli %87, %88 : vector<16x128xi32>
    %c15_i32_27 = arith.constant 15 : i32
    %90 = vector.broadcast %c15_i32_27 : i32 to vector<16x128xi32>
    %91 = arith.shrui %89, %90 : vector<16x128xi32>
    %92 = arith.xori %89, %91 : vector<16x128xi32>
    %c-2073254261_i32_28 = arith.constant -2073254261 : i32
    %93 = vector.broadcast %c-2073254261_i32_28 : i32 to vector<16x128xi32>
    %94 = arith.muli %92, %93 : vector<16x128xi32>
    %c16_i32_29 = arith.constant 16 : i32
    %95 = vector.broadcast %c16_i32_29 : i32 to vector<16x128xi32>
    %96 = arith.shrui %94, %95 : vector<16x128xi32>
    %97 = arith.xori %94, %96 : vector<16x128xi32>
    %c65535_i32_30 = arith.constant 65535 : i32
    %98 = vector.broadcast %c65535_i32_30 : i32 to vector<16x128xi32>
    %99 = arith.andi %97, %98 : vector<16x128xi32>
    %100 = arith.sitofp %99 : vector<16x128xi32> to vector<16x128xf32>
    %c16_i32_31 = arith.constant 16 : i32
    %101 = vector.broadcast %c16_i32_31 : i32 to vector<16x128xi32>
    %102 = arith.shrui %97, %101 : vector<16x128xi32>
    %103 = arith.sitofp %102 : vector<16x128xi32> to vector<16x128xf32>
    %104 = arith.addf %73, %100 : vector<16x128xf32>
    %105 = arith.addf %104, %103 : vector<16x128xf32>
    %c2027808484_i32 = arith.constant 2027808484 : i32
    %106 = arith.addi %8, %c2027808484_i32 : i32
    %c16_i32_32 = arith.constant 16 : i32
    %107 = arith.shrui %106, %c16_i32_32 : i32
    %108 = arith.xori %106, %107 : i32
    %c2146121005_i32_33 = arith.constant 2146121005 : i32
    %109 = arith.muli %108, %c2146121005_i32_33 : i32
    %c15_i32_34 = arith.constant 15 : i32
    %110 = arith.shrui %109, %c15_i32_34 : i32
    %111 = arith.xori %109, %110 : i32
    %c-2073254261_i32_35 = arith.constant -2073254261 : i32
    %112 = arith.muli %111, %c-2073254261_i32_35 : i32
    %c16_i32_36 = arith.constant 16 : i32
    %113 = arith.shrui %112, %c16_i32_36 : i32
    %114 = arith.xori %112, %113 : i32
    %115 = vector.broadcast %114 : i32 to vector<16x128xi32>
    %116 = arith.xori %7, %115 : vector<16x128xi32>
    %c16_i32_37 = arith.constant 16 : i32
    %117 = vector.broadcast %c16_i32_37 : i32 to vector<16x128xi32>
    %118 = arith.shrui %116, %117 : vector<16x128xi32>
    %119 = arith.xori %116, %118 : vector<16x128xi32>
    %c2146121005_i32_38 = arith.constant 2146121005 : i32
    %120 = vector.broadcast %c2146121005_i32_38 : i32 to vector<16x128xi32>
    %121 = arith.muli %119, %120 : vector<16x128xi32>
    %c15_i32_39 = arith.constant 15 : i32
    %122 = vector.broadcast %c15_i32_39 : i32 to vector<16x128xi32>
    %123 = arith.shrui %121, %122 : vector<16x128xi32>
    %124 = arith.xori %121, %123 : vector<16x128xi32>
    %c-2073254261_i32_40 = arith.constant -2073254261 : i32
    %125 = vector.broadcast %c-2073254261_i32_40 : i32 to vector<16x128xi32>
    %126 = arith.muli %124, %125 : vector<16x128xi32>
    %c16_i32_41 = arith.constant 16 : i32
    %127 = vector.broadcast %c16_i32_41 : i32 to vector<16x128xi32>
    %128 = arith.shrui %126, %127 : vector<16x128xi32>
    %129 = arith.xori %126, %128 : vector<16x128xi32>
    %c65535_i32_42 = arith.constant 65535 : i32
    %130 = vector.broadcast %c65535_i32_42 : i32 to vector<16x128xi32>
    %131 = arith.andi %129, %130 : vector<16x128xi32>
    %132 = arith.sitofp %131 : vector<16x128xi32> to vector<16x128xf32>
    %c16_i32_43 = arith.constant 16 : i32
    %133 = vector.broadcast %c16_i32_43 : i32 to vector<16x128xi32>
    %134 = arith.shrui %129, %133 : vector<16x128xi32>
    %135 = arith.sitofp %134 : vector<16x128xi32> to vector<16x128xf32>
    %136 = arith.addf %105, %132 : vector<16x128xf32>
    %137 = arith.addf %136, %135 : vector<16x128xf32>
    %c387276957_i32 = arith.constant 387276957 : i32
    %138 = arith.addi %8, %c387276957_i32 : i32
    %c16_i32_44 = arith.constant 16 : i32
    %139 = arith.shrui %138, %c16_i32_44 : i32
    %140 = arith.xori %138, %139 : i32
    %c2146121005_i32_45 = arith.constant 2146121005 : i32
    %141 = arith.muli %140, %c2146121005_i32_45 : i32
    %c15_i32_46 = arith.constant 15 : i32
    %142 = arith.shrui %141, %c15_i32_46 : i32
    %143 = arith.xori %141, %142 : i32
    %c-2073254261_i32_47 = arith.constant -2073254261 : i32
    %144 = arith.muli %143, %c-2073254261_i32_47 : i32
    %c16_i32_48 = arith.constant 16 : i32
    %145 = arith.shrui %144, %c16_i32_48 : i32
    %146 = arith.xori %144, %145 : i32
    %147 = vector.broadcast %146 : i32 to vector<16x128xi32>
    %148 = arith.xori %7, %147 : vector<16x128xi32>
    %c16_i32_49 = arith.constant 16 : i32
    %149 = vector.broadcast %c16_i32_49 : i32 to vector<16x128xi32>
    %150 = arith.shrui %148, %149 : vector<16x128xi32>
    %151 = arith.xori %148, %150 : vector<16x128xi32>
    %c2146121005_i32_50 = arith.constant 2146121005 : i32
    %152 = vector.broadcast %c2146121005_i32_50 : i32 to vector<16x128xi32>
    %153 = arith.muli %151, %152 : vector<16x128xi32>
    %c15_i32_51 = arith.constant 15 : i32
    %154 = vector.broadcast %c15_i32_51 : i32 to vector<16x128xi32>
    %155 = arith.shrui %153, %154 : vector<16x128xi32>
    %156 = arith.xori %153, %155 : vector<16x128xi32>
    %c-2073254261_i32_52 = arith.constant -2073254261 : i32
    %157 = vector.broadcast %c-2073254261_i32_52 : i32 to vector<16x128xi32>
    %158 = arith.muli %156, %157 : vector<16x128xi32>
    %c16_i32_53 = arith.constant 16 : i32
    %159 = vector.broadcast %c16_i32_53 : i32 to vector<16x128xi32>
    %160 = arith.shrui %158, %159 : vector<16x128xi32>
    %161 = arith.xori %158, %160 : vector<16x128xi32>
    %c65535_i32_54 = arith.constant 65535 : i32
    %162 = vector.broadcast %c65535_i32_54 : i32 to vector<16x128xi32>
    %163 = arith.andi %161, %162 : vector<16x128xi32>
    %164 = arith.sitofp %163 : vector<16x128xi32> to vector<16x128xf32>
    %c16_i32_55 = arith.constant 16 : i32
    %165 = vector.broadcast %c16_i32_55 : i32 to vector<16x128xi32>
    %166 = arith.shrui %161, %165 : vector<16x128xi32>
    %167 = arith.sitofp %166 : vector<16x128xi32> to vector<16x128xf32>
    %168 = arith.addf %137, %164 : vector<16x128xf32>
    %169 = arith.addf %168, %167 : vector<16x128xf32>
    %c-1253254570_i32 = arith.constant -1253254570 : i32
    %170 = arith.addi %8, %c-1253254570_i32 : i32
    %c16_i32_56 = arith.constant 16 : i32
    %171 = arith.shrui %170, %c16_i32_56 : i32
    %172 = arith.xori %170, %171 : i32
    %c2146121005_i32_57 = arith.constant 2146121005 : i32
    %173 = arith.muli %172, %c2146121005_i32_57 : i32
    %c15_i32_58 = arith.constant 15 : i32
    %174 = arith.shrui %173, %c15_i32_58 : i32
    %175 = arith.xori %173, %174 : i32
    %c-2073254261_i32_59 = arith.constant -2073254261 : i32
    %176 = arith.muli %175, %c-2073254261_i32_59 : i32
    %c16_i32_60 = arith.constant 16 : i32
    %177 = arith.shrui %176, %c16_i32_60 : i32
    %178 = arith.xori %176, %177 : i32
    %179 = vector.broadcast %178 : i32 to vector<16x128xi32>
    %180 = arith.xori %7, %179 : vector<16x128xi32>
    %c16_i32_61 = arith.constant 16 : i32
    %181 = vector.broadcast %c16_i32_61 : i32 to vector<16x128xi32>
    %182 = arith.shrui %180, %181 : vector<16x128xi32>
    %183 = arith.xori %180, %182 : vector<16x128xi32>
    %c2146121005_i32_62 = arith.constant 2146121005 : i32
    %184 = vector.broadcast %c2146121005_i32_62 : i32 to vector<16x128xi32>
    %185 = arith.muli %183, %184 : vector<16x128xi32>
    %c15_i32_63 = arith.constant 15 : i32
    %186 = vector.broadcast %c15_i32_63 : i32 to vector<16x128xi32>
    %187 = arith.shrui %185, %186 : vector<16x128xi32>
    %188 = arith.xori %185, %187 : vector<16x128xi32>
    %c-2073254261_i32_64 = arith.constant -2073254261 : i32
    %189 = vector.broadcast %c-2073254261_i32_64 : i32 to vector<16x128xi32>
    %190 = arith.muli %188, %189 : vector<16x128xi32>
    %c16_i32_65 = arith.constant 16 : i32
    %191 = vector.broadcast %c16_i32_65 : i32 to vector<16x128xi32>
    %192 = arith.shrui %190, %191 : vector<16x128xi32>
    %193 = arith.xori %190, %192 : vector<16x128xi32>
    %c65535_i32_66 = arith.constant 65535 : i32
    %194 = vector.broadcast %c65535_i32_66 : i32 to vector<16x128xi32>
    %195 = arith.andi %193, %194 : vector<16x128xi32>
    %196 = arith.sitofp %195 : vector<16x128xi32> to vector<16x128xf32>
    %c16_i32_67 = arith.constant 16 : i32
    %197 = vector.broadcast %c16_i32_67 : i32 to vector<16x128xi32>
    %198 = arith.shrui %193, %197 : vector<16x128xi32>
    %199 = arith.sitofp %198 : vector<16x128xi32> to vector<16x128xf32>
    %200 = arith.addf %169, %196 : vector<16x128xf32>
    %201 = arith.addf %200, %199 : vector<16x128xf32>
    %cst_68 = arith.constant 3.932100e+05 : f32
    %202 = vector.broadcast %cst_68 : f32 to vector<16x128xf32>
    %203 = arith.subf %201, %202 : vector<16x128xf32>
    %cst_69 = arith.constant 1.52587891E-5 : f32
    %204 = vector.broadcast %cst_69 : f32 to vector<16x128xf32>
    %205 = arith.mulf %203, %204 : vector<16x128xf32>
    %c0_70 = arith.constant 0 : index
    %c0_71 = arith.constant 0 : index
    %206 = vector.load %arg2[%c0_70, %c0_71] : memref<16x128xf32, #tpu.memory_space<vmem>>, vector<16x128xf32>
    %cst_72 = arith.constant 1.000000e-01 : f32
    %207 = vector.broadcast %cst_72 : f32 to vector<16x128xf32>
    %208 = arith.mulf %207, %205 : vector<16x128xf32>
    %cst_73 = arith.constant 0.000000e+00 : f32
    %209 = vector.broadcast %cst_73 : f32 to vector<16x128xf32>
    %210 = arith.addf %209, %208 : vector<16x128xf32>
    %211 = arith.addf %206, %210 : vector<16x128xf32>
    %c0_74 = arith.constant 0 : index
    %c0_75 = arith.constant 0 : index
    %212 = vector.load %arg3[%c0_74, %c0_75] : memref<16x128xf32, #tpu.memory_space<vmem>>, vector<16x128xf32>
    tpu.vector_store %arg3[%c0_74, %c0_75], %211 {strides = array<i32>} : memref<16x128xf32, #tpu.memory_space<vmem>>, vector<16x128xf32>,
    return
  }
  func.func @transform_0(%arg0: i32) -> i32 {
    %c0_i32 = arith.constant 0 : i32
    %c0_i32_0 = arith.constant 0 : i32
    return %c0_i32 : i32
  }
  func.func @transform_1(%arg0: i32) -> (i32, i32) {
    %c0_i32 = arith.constant 0 : i32
    %c0_i32_0 = arith.constant 0 : i32
    return %arg0, %c0_i32 : i32, i32
  }
  func.func @transform_2(%arg0: i32) -> (i32, i32) {
    %c0_i32 = arith.constant 0 : i32
    %c0_i32_0 = arith.constant 0 : i32
    return %arg0, %c0_i32 : i32, i32
  }
}

</mosaic_0001>

<llo_original>
// kernel: tpu_custom_call.1
$region0: #{tpu_custom_call.1}
  #allocation0 [shape = 'u32[]', space=smem, size = 0x4, offset = 0x4, fixed_abs, tag = 'smem constant byte address 0x4 - core index']
  #allocation1 [shape = 'u32[144,128]{1,0:T(1,128)}', space=vmem, size = 0x12000, scoped, tag = 'internal scratch']
  #allocation2 [shape = 's32[1]{0:T(128)S(6)}', space=smem, size = 0x200, scoped, tag = 'scoped memory for tpu_custom_call.1']
  %s0 = inlined_call_operand.<no memory space> [shape: s32[1], index: 0, kind: input, shape index: {}]
  %s1 = inlined_call_operand.hbm [shape: f32[16,128], index: 1, kind: input, shape index: {}]
  %s2 = inlined_call_operand.hbm [shape: f32[16,128], index: 2, kind: output, shape index: {}]
  %s3 = sld [smem:[#allocation0]]
  $region22: #{tpu_custom_call.1} parent=0
    _
  %s5 = ssub.s32 1, %s3
  %s6 = scalar_select 0, %s5, %s3
  %7 = sst [smem:[#allocation2]] %s0
  $region1: #{tpu_custom_call.1} parent=0
    #allocation3 [shape = 'u8[8192]{0}', space=vmem, size = 0x2000, scoped, tag = 'input window, operand 1, single buffered']
    #allocation4 [shape = 's32[1]{0}', space=sflag, size = 0x4, scoped, tag = 'scoped memory for tpu_custom_call.1']
    #allocation5 [shape = 's32[1]{0}', space=sflag, size = 0x4, scoped, tag = 'scoped memory for tpu_custom_call.1']
    #allocation6 [shape = 'u8[8192]{0}', space=vmem, size = 0x2000, scoped, tag = 'output window, operand 0, single buffered']
    %8 = vsyncpa [#allocation4], 0
    %9 = vsyncpa [#allocation5], 0
    // Predicated region
    $region2: #{tpu_custom_call.1} parent=1 // pred_check
      _
    $region3: #{tpu_custom_call.1} parent=1 // pred_check_branch
      %11 = sbr.rel (0) target = $region5
    $region4: #{tpu_custom_call.1} parent=1 // pred_region
      _
    $region5: #{tpu_custom_call.1} parent=1 // pred_fallthru
      _
    // Predicated region
    $region6: #{tpu_custom_call.1} parent=1 // pred_check
      _
    $region7: #{tpu_custom_call.1} parent=1 // pred_check_branch
      %13 = sbr.rel (0) target = $region9
    $region8: #{tpu_custom_call.1} parent=1 // pred_region
      %s15 = ssub.s32 256, 256
      %16 = vsyncadd [#allocation4], %s15
      %s17 = sshll.u32 [#allocation3], 4
      %s18 = int_to_ptr.vmem [resolvable:$true] %s17
      %23 = dma.hbm_to_vmem [thread:$0]  %s1, 256, %s18, [#allocation4], 128, 128, 8
    $region9: #{tpu_custom_call.1} parent=1 // pred_fallthru
      _
    // Predicated region
    $region10: #{tpu_custom_call.1} parent=1 // pred_check
      _
    $region11: #{tpu_custom_call.1} parent=1 // pred_check_branch
      %25 = sbr.rel (0) target = $region13
    $region12: #{tpu_custom_call.1} parent=1 // pred_region
      %26 = dma.done [#allocation4], 256
    $region13: #{tpu_custom_call.1} parent=1 // pred_fallthru
      _
    %s27 = smul.u32 0, 16
    %v28 = vlaneseq
    %v29 = vshrl.u32 %v28, 7
    %v30 = vadd.s32 %v29, 8
    %v31 = vstv %s27
    %v32 = vadd.s32 %v29, %v31
    %v33 = vadd.s32 %v30, %v31
    %v34 = vlaneseq
    %v35 = vand.u32 %v34, 127
    %v36 = vmul.u32 %v32, 128
    %v37 = vmul.u32 %v33, 128
    %v38 = vadd.s32 %v36, %v35
    %v39 = vadd.s32 %v37, %v35
    %s40 = sld [smem:[#allocation2]]
    %s41 = sadd.s32 %s40, 2654435769
    %s42 = sshrl.u32 %s41, 16
    %s43 = sxor.u32 %s41, %s42
    %s44 = smul.u32 %s43, 2146121005
    %s45 = sshrl.u32 %s44, 15
    %s46 = sxor.u32 %s44, %s45
    %s47 = smul.u32 %s46, 2221713035
    %s48 = sshrl.u32 %s47, 16
    %s49 = sxor.u32 %s47, %s48
    %v50 = vstv %s49
    %v51 = vxor.u32 %v38, %v50
    %v52 = vxor.u32 %v39, %v50
    %v53 = vshrl.u32 %v51, 16
    %v54 = vshrl.u32 %v52, 16
    %v55 = vxor.u32 %v51, %v53
    %v56 = vxor.u32 %v52, %v54
    %v57 = vmul.u32 %v55, 2146121005
    %v58 = vmul.u32 %v56, 2146121005
    %v59 = vshrl.u32 %v57, 15
    %v60 = vshrl.u32 %v58, 15
    %v61 = vxor.u32 %v57, %v59
    %v62 = vxor.u32 %v58, %v60
    %v63 = vmul.u32 %v61, 2221713035
    %v64 = vmul.u32 %v62, 2221713035
    %v65 = vshrl.u32 %v63, 16
    %v66 = vshrl.u32 %v64, 16
    %v67 = vxor.u32 %v63, %v65
    %v68 = vxor.u32 %v64, %v66
    %v69 = vand.u32 %v67, 65535
    %v70 = vand.u32 %v68, 65535
    %v71 = vcvt.s32.f32 %v69
    %v72 = vcvt.s32.f32 %v70
    %v73 = vshrl.u32 %v67, 16
    %v74 = vshrl.u32 %v68, 16
    %v75 = vcvt.s32.f32 %v73
    %v76 = vcvt.s32.f32 %v74
    %v77 = vadd.f32 %v71, 0.0
    %v78 = vadd.f32 %v72, 0.0
    %v79 = vadd.f32 %v77, %v75
    %v80 = vadd.f32 %v78, %v76
    %s81 = sadd.s32 %s40, 1013904242
    %s82 = sshrl.u32 %s81, 16
    %s83 = sxor.u32 %s81, %s82
    %s84 = smul.u32 %s83, 2146121005
    %s85 = sshrl.u32 %s84, 15
    %s86 = sxor.u32 %s84, %s85
    %s87 = smul.u32 %s86, 2221713035
    %s88 = sshrl.u32 %s87, 16
    %s89 = sxor.u32 %s87, %s88
    %v90 = vstv %s89
    %v91 = vxor.u32 %v38, %v90
    %v92 = vxor.u32 %v39, %v90
    %v93 = vshrl.u32 %v91, 16
    %v94 = vshrl.u32 %v92, 16
    %v95 = vxor.u32 %v91, %v93
    %v96 = vxor.u32 %v92, %v94
    %v97 = vmul.u32 %v95, 2146121005
    %v98 = vmul.u32 %v96, 2146121005
    %v99 = vshrl.u32 %v97, 15
    %v100 = vshrl.u32 %v98, 15
    %v101 = vxor.u32 %v97, %v99
    %v102 = vxor.u32 %v98, %v100
    %v103 = vmul.u32 %v101, 2221713035
    %v104 = vmul.u32 %v102, 2221713035
    %v105 = vshrl.u32 %v103, 16
    %v106 = vshrl.u32 %v104, 16
    %v107 = vxor.u32 %v103, %v105
    %v108 = vxor.u32 %v104, %v106
    %v109 = vand.u32 %v107, 65535
    %v110 = vand.u32 %v108, 65535
    %v111 = vcvt.s32.f32 %v109
    %v112 = vcvt.s32.f32 %v110
    %v113 = vshrl.u32 %v107, 16
    %v114 = vshrl.u32 %v108, 16
    %v115 = vcvt.s32.f32 %v113
    %v116 = vcvt.s32.f32 %v114
    %v117 = vadd.f32 %v79, %v111
    %v118 = vadd.f32 %v80, %v112
    %v119 = vadd.f32 %v117, %v115
    %v120 = vadd.f32 %v118, %v116
    %s121 = sadd.s32 %s40, 3668340011
    %s122 = sshrl.u32 %s121, 16
    %s123 = sxor.u32 %s121, %s122
    %s124 = smul.u32 %s123, 2146121005
    %s125 = sshrl.u32 %s124, 15
    %s126 = sxor.u32 %s124, %s125
    %s127 = smul.u32 %s126, 2221713035
    %s128 = sshrl.u32 %s127, 16
    %s129 = sxor.u32 %s127, %s128
    %v130 = vstv %s129
    %v131 = vxor.u32 %v38, %v130
    %v132 = vxor.u32 %v39, %v130
    %v133 = vshrl.u32 %v131, 16
    %v134 = vshrl.u32 %v132, 16
    %v135 = vxor.u32 %v131, %v133
    %v136 = vxor.u32 %v132, %v134
    %v137 = vmul.u32 %v135, 2146121005
    %v138 = vmul.u32 %v136, 2146121005
    %v139 = vshrl.u32 %v137, 15
    %v140 = vshrl.u32 %v138, 15
    %v141 = vxor.u32 %v137, %v139
    %v142 = vxor.u32 %v138, %v140
    %v143 = vmul.u32 %v141, 2221713035
    %v144 = vmul.u32 %v142, 2221713035
    %v145 = vshrl.u32 %v143, 16
    %v146 = vshrl.u32 %v144, 16
    %v147 = vxor.u32 %v143, %v145
    %v148 = vxor.u32 %v144, %v146
    %v149 = vand.u32 %v147, 65535
    %v150 = vand.u32 %v148, 65535
    %v151 = vcvt.s32.f32 %v149
    %v152 = vcvt.s32.f32 %v150
    %v153 = vshrl.u32 %v147, 16
    %v154 = vshrl.u32 %v148, 16
    %v155 = vcvt.s32.f32 %v153
    %v156 = vcvt.s32.f32 %v154
    %v157 = vadd.f32 %v119, %v151
    %v158 = vadd.f32 %v120, %v152
    %v159 = vadd.f32 %v157, %v155
    %v160 = vadd.f32 %v158, %v156
    %s161 = sadd.s32 %s40, 2027808484
    %s162 = sshrl.u32 %s161, 16
    %s163 = sxor.u32 %s161, %s162
    %s164 = smul.u32 %s163, 2146121005
    %s165 = sshrl.u32 %s164, 15
    %s166 = sxor.u32 %s164, %s165
    %s167 = smul.u32 %s166, 2221713035
    %s168 = sshrl.u32 %s167, 16
    %s169 = sxor.u32 %s167, %s168
    %v170 = vstv %s169
    %v171 = vxor.u32 %v38, %v170
    %v172 = vxor.u32 %v39, %v170
    %v173 = vshrl.u32 %v171, 16
    %v174 = vshrl.u32 %v172, 16
    %v175 = vxor.u32 %v171, %v173
    %v176 = vxor.u32 %v172, %v174
    %v177 = vmul.u32 %v175, 2146121005
    %v178 = vmul.u32 %v176, 2146121005
    %v179 = vshrl.u32 %v177, 15
    %v180 = vshrl.u32 %v178, 15
    %v181 = vxor.u32 %v177, %v179
    %v182 = vxor.u32 %v178, %v180
    %v183 = vmul.u32 %v181, 2221713035
    %v184 = vmul.u32 %v182, 2221713035
    %v185 = vshrl.u32 %v183, 16
    %v186 = vshrl.u32 %v184, 16
    %v187 = vxor.u32 %v183, %v185
    %v188 = vxor.u32 %v184, %v186
    %v189 = vand.u32 %v187, 65535
    %v190 = vand.u32 %v188, 65535
    %v191 = vcvt.s32.f32 %v189
    %v192 = vcvt.s32.f32 %v190
    %v193 = vshrl.u32 %v187, 16
    %v194 = vshrl.u32 %v188, 16
    %v195 = vcvt.s32.f32 %v193
    %v196 = vcvt.s32.f32 %v194
    %v197 = vadd.f32 %v159, %v191
    %v198 = vadd.f32 %v160, %v192
    %v199 = vadd.f32 %v197, %v195
    %v200 = vadd.f32 %v198, %v196
    %s201 = sadd.s32 %s40, 387276957
    %s202 = sshrl.u32 %s201, 16
    %s203 = sxor.u32 %s201, %s202
    %s204 = smul.u32 %s203, 2146121005
    %s205 = sshrl.u32 %s204, 15
    %s206 = sxor.u32 %s204, %s205
    %s207 = smul.u32 %s206, 2221713035
    %s208 = sshrl.u32 %s207, 16
    %s209 = sxor.u32 %s207, %s208
    %v210 = vstv %s209
    %v211 = vxor.u32 %v38, %v210
    %v212 = vxor.u32 %v39, %v210
    %v213 = vshrl.u32 %v211, 16
    %v214 = vshrl.u32 %v212, 16
    %v215 = vxor.u32 %v211, %v213
    %v216 = vxor.u32 %v212, %v214
    %v217 = vmul.u32 %v215, 2146121005
    %v218 = vmul.u32 %v216, 2146121005
    %v219 = vshrl.u32 %v217, 15
    %v220 = vshrl.u32 %v218, 15
    %v221 = vxor.u32 %v217, %v219
    %v222 = vxor.u32 %v218, %v220
    %v223 = vmul.u32 %v221, 2221713035
    %v224 = vmul.u32 %v222, 2221713035
    %v225 = vshrl.u32 %v223, 16
    %v226 = vshrl.u32 %v224, 16
    %v227 = vxor.u32 %v223, %v225
    %v228 = vxor.u32 %v224, %v226
    %v229 = vand.u32 %v227, 65535
    %v230 = vand.u32 %v228, 65535
    %v231 = vcvt.s32.f32 %v229
    %v232 = vcvt.s32.f32 %v230
    %v233 = vshrl.u32 %v227, 16
    %v234 = vshrl.u32 %v228, 16
    %v235 = vcvt.s32.f32 %v233
    %v236 = vcvt.s32.f32 %v234
    %v237 = vadd.f32 %v199, %v231
    %v238 = vadd.f32 %v200, %v232
    %v239 = vadd.f32 %v237, %v235
    %v240 = vadd.f32 %v238, %v236
    %s241 = sadd.s32 %s40, 3041712726
    %s242 = sshrl.u32 %s241, 16
    %s243 = sxor.u32 %s241, %s242
    %s244 = smul.u32 %s243, 2146121005
    %s245 = sshrl.u32 %s244, 15
    %s246 = sxor.u32 %s244, %s245
    %s247 = smul.u32 %s246, 2221713035
    %s248 = sshrl.u32 %s247, 16
    %s249 = sxor.u32 %s247, %s248
    %v250 = vstv %s249
    %v251 = vxor.u32 %v38, %v250
    %v252 = vxor.u32 %v39, %v250
    %v253 = vshrl.u32 %v251, 16
    %v254 = vshrl.u32 %v252, 16
    %v255 = vxor.u32 %v251, %v253
    %v256 = vxor.u32 %v252, %v254
    %v257 = vmul.u32 %v255, 2146121005
    %v258 = vmul.u32 %v256, 2146121005
    %v259 = vshrl.u32 %v257, 15
    %v260 = vshrl.u32 %v258, 15
    %v261 = vxor.u32 %v257, %v259
    %v262 = vxor.u32 %v258, %v260
    %v263 = vmul.u32 %v261, 2221713035
    %v264 = vmul.u32 %v262, 2221713035
    %v265 = vshrl.u32 %v263, 16
    %v266 = vshrl.u32 %v264, 16
    %v267 = vxor.u32 %v263, %v265
    %v268 = vxor.u32 %v264, %v266
    %v269 = vand.u32 %v267, 65535
    %v270 = vand.u32 %v268, 65535
    %v271 = vcvt.s32.f32 %v269
    %v272 = vcvt.s32.f32 %v270
    %v273 = vshrl.u32 %v267, 16
    %v274 = vshrl.u32 %v268, 16
    %v275 = vcvt.s32.f32 %v273
    %v276 = vcvt.s32.f32 %v274
    %v277 = vadd.f32 %v239, %v271
    %v278 = vadd.f32 %v240, %v272
    %v279 = vadd.f32 %v277, %v275
    %v280 = vadd.f32 %v278, %v276
    %v281 = vsub.f32 %v279, 393210.0
    %v282 = vsub.f32 %v280, 393210.0
    %v283 = vmul.f32 %v281, 1.5258789e-05
    %v284 = vmul.f32 %v282, 1.5258789e-05
    %v285 = vld [vmem:[#allocation3] sm:$0xff]
    %v286 = vld [vmem:[#allocation3 + $0x8] sm:$0xff]
    %v287 = vmul.f32 %v283, 0.1
    %v288 = vmul.f32 %v284, 0.1
    %v289 = vadd.f32 %v287, 0.0
    %v290 = vadd.f32 %v288, 0.0
    %v291 = vadd.f32 %v285, %v289
    %v292 = vadd.f32 %v286, %v290
    %293 = vst [vmem:[#allocation6] sm:$0xff] %v291
    %294 = vst [vmem:[#allocation6 + $0x8] sm:$0xff] %v292
    // Predicated region
    $region14: #{tpu_custom_call.1} parent=1 // pred_check
      _
    $region15: #{tpu_custom_call.1} parent=1 // pred_check_branch
      %296 = sbr.rel (0) target = $region17
    $region16: #{tpu_custom_call.1} parent=1 // pred_region
      %s298 = ssub.s32 256, 256
      %299 = vsyncadd [#allocation5], %s298
      %s300 = sshll.u32 [#allocation6], 4
      %s301 = int_to_ptr.vmem [resolvable:$true] %s300
      %306 = dma.vmem_to_hbm [thread:$0]  %s301, 256, %s2, [#allocation5], 128, 128, 8
    $region17: #{tpu_custom_call.1} parent=1 // pred_fallthru
      _
    // Predicated region
    $region18: #{tpu_custom_call.1} parent=1 // pred_check
      _
    $region19: #{tpu_custom_call.1} parent=1 // pred_check_branch
      %308 = sbr.rel (0) target = $region21
    $region20: #{tpu_custom_call.1} parent=1 // pred_region
      %309 = dma.done [#allocation5], 256
    $region21: #{tpu_custom_call.1} parent=1 // pred_fallthru
      _
    %310 = vsyncpa [#allocation4], 1
    %311 = vsyncpa [#allocation5], 1

</llo_original>
